<compile_context>
chip_gen: v7x
topology: tpu7x:2x2x1
jax: 0.10.0
libtpu: 0.0.40
codegen_flags: <defaults>
</compile_context>

<pallas_src>
import numpy as np
import ml_dtypes                      # ships with jax; used only for host-side bf16 rounding
import jax
import jax.numpy as jnp
from jax.experimental import pallas as pl
from jax.experimental.pallas import tpu as pltpu

# ------------------------- synthetic deterministic tree -------------------------
N_INTERNAL = 4                                   # children of root (internal nodes)
N_LEAF_PER = 3                                   # leaves per internal node
D = N_INTERNAL + N_INTERNAL * N_LEAF_PER         # 16 logits per example
N_LEAVES = N_INTERNAL * N_LEAF_PER               # 12
K_PAD = 16                                       # leaf axis padded to a sublane multiple
CT_ROWS = D + 3                                  # lin (D) + alse0 + alse1 + group-start
CT_ROWS_PAD = 24                                 # padded to a multiple of 8 sublanes
_NEG = np.float32(-1e30)                         # "outside group" fill (groups never empty)

# per-parent attributes (deterministic, no checkpoint load)
ALPHA_ROOT = np.float32(1.0)
LS_ROOT = np.float32(0.10)
W_ROOT = np.linspace(0.5, 1.5, N_INTERNAL).astype(np.float32)

ALPHA_INT = (1.0 + 0.1 * np.arange(N_INTERNAL)).astype(np.float32)
LS_INT = (0.05 * (np.arange(N_INTERNAL) + 1)).astype(np.float32)
W_INT = np.stack(
    [np.linspace(0.8, 1.2, N_LEAF_PER) * (1.0 + 0.05 * i) for i in range(N_INTERNAL)]
).astype(np.float32)

# class weight laid out over the full prediction vector
W_FULL = np.zeros((D,), np.float32)
W_FULL[:N_INTERNAL] = W_ROOT
for _i in range(N_INTERNAL):
    _s = N_INTERNAL + _i * N_LEAF_PER
    W_FULL[_s:_s + N_LEAF_PER] = W_INT[_i]


# --------------------- host-side per-LEAF constant table (O(tree)) ---------------------
def build_constant_table():
    """Fold the tree walk into a per-leaf table; returns f32 [2*CT_ROWS_PAD, K_PAD].

    Row layout (per leaf column):
      [0:D)   LIN   — linear coefficient on the raw logits (alpha / label_smoothing /
                      class-weight terms folded in, computed in float64)
      [D]     ALSE0 — coefficient on logsumexp of the leaf's parent softmax group
      [D+1]   ALSE1 — coefficient on logsumexp of the root softmax group
      [D+2]   START — start row of the leaf's parent softmax group
      rest    zero padding
    The table is stored twice: bf16-exact "hi" rows then f32 residual "lo" rows, so a
    one-hot matmul reconstructs the f32 values exactly even if the MXU rounds operands
    to bf16.
    """
    wfull = W_FULL.astype(np.float64)
    lin = np.zeros((N_LEAVES, D), np.float64)
    alse = np.zeros((N_LEAVES, 2), np.float64)
    start = np.zeros((N_LEAVES,), np.float64)

    for leaf in range(N_LEAVES):
        p = leaf // N_LEAF_PER
        # level 0: the leaf's parent softmax group
        s = N_INTERNAL + p * N_LEAF_PER
        t = s + (leaf % N_LEAF_PER)
        alpha, ls, c = float(ALPHA_INT[p]), float(LS_INT[p]), float(N_LEAF_PER)
        w = wfull[s:s + N_LEAF_PER]
        w_t = wfull[t]
        alse[leaf, 0] = alpha * ((1.0 - ls) + (ls / c) * (w.sum() / w_t))
        lin[leaf, t] += alpha * (1.0 - ls)
        lin[leaf, s:s + N_LEAF_PER] += (alpha * ls / (c * w_t)) * w
        start[leaf] = s
        # level 1: root softmax group
        alpha, ls, c = float(ALPHA_ROOT), float(LS_ROOT), float(N_INTERNAL)
        w = wfull[0:N_INTERNAL]
        w_t = wfull[p]
        alse[leaf, 1] = alpha * ((1.0 - ls) + (ls / c) * (w.sum() / w_t))
        lin[leaf, p] += alpha * (1.0 - ls)
        lin[leaf, 0:N_INTERNAL] += (alpha * ls / (c * w_t)) * w

    ct = np.zeros((CT_ROWS_PAD, K_PAD), np.float64)
    ct[0:D, 0:N_LEAVES] = lin.T
    ct[D, 0:N_LEAVES] = alse[:, 0]
    ct[D + 1, 0:N_LEAVES] = alse[:, 1]
    ct[D + 2, 0:N_LEAVES] = start

    ct32 = ct.astype(np.float32)
    hi = ct32.astype(ml_dtypes.bfloat16).astype(np.float32)   # bf16-exact part
    lo = (ct32 - hi).astype(np.float32)                       # f32 residual
    return np.concatenate([hi, lo], axis=0)                   # [2*CT_ROWS_PAD, K_PAD]


CTAB_HILO = build_constant_table()


# ------------------------------- Pallas kernel ----------------------------------
def _hsm_loss_kernel(tgt_ref, xT_ref, ctab_ref, out_ref):
    # tgt_ref : [1, bt]  int32 leaf target, one example per lane
    # xT_ref  : [D, bt]  f32 logits, classes on sublanes, batch on lanes
    # ctab_ref: [2*CT_ROWS_PAD, K_PAD] f32 per-leaf constant table (hi rows then lo rows)
    # out_ref : [1, bt]  f32 per-example loss
    x = xT_ref[...]                                            # [D, bt]
    tgt = tgt_ref[...]                                         # [1, bt]
    bt = x.shape[1]

    # one-hot over (padded) leaf ids, lane-dense; padded rows never match a target
    leaf_iota = jax.lax.broadcasted_iota(jnp.int32, (K_PAD, bt), 0)
    onehot = jnp.where(leaf_iota == tgt, jnp.float32(1.0), jnp.float32(0.0))   # [K_PAD, bt]

    # gather per-example constants on the otherwise-idle MXU (hi + lo keeps it f32-exact)
    full = jnp.dot(ctab_ref[...], onehot, preferred_element_type=jnp.float32)  # [2*CT_ROWS_PAD, bt]
    meta = full[0:CT_ROWS_PAD, :] + full[CT_ROWS_PAD:2 * CT_ROWS_PAD, :]       # [CT_ROWS_PAD, bt]

    lin = meta[0:D, :]                                         # [D, bt]
    alse0 = meta[D:D + 1, :]                                   # [1, bt]
    alse1 = meta[D + 1:D + 2, :]                               # [1, bt]
    start = meta[D + 2:D + 3, :].astype(jnp.int32)             # [1, bt] (exact small ints)

    # linear term: single sublane reduction
    acc = -jnp.sum(lin * x, axis=0, keepdims=True)             # [1, bt]

    row = jax.lax.broadcasted_iota(jnp.int32, (D, bt), 0)      # class index per sublane

    # level 0: the target leaf's parent softmax group (data-dependent rows)
    in0 = (row >= start) & (row < start + N_LEAF_PER)
    xm0 = jnp.where(in0, x, _NEG)
    m0 = jnp.max(xm0, axis=0, keepdims=True)
    s0 = jnp.sum(jnp.exp(xm0 - m0), axis=0, keepdims=True)
    acc = acc + alse0 * (m0 + jnp.log(s0))

    # level 1: root softmax group (static rows [0, N_INTERNAL))
    xm1 = jnp.where(row < N_INTERNAL, x, _NEG)
    m1 = jnp.max(xm1, axis=0, keepdims=True)
    s1 = jnp.sum(jnp.exp(xm1 - m1), axis=0, keepdims=True)
    acc = acc + alse1 * (m1 + jnp.log(s1))

    out_ref[...] = acc


def hierarchical_softmax_loss(preds, targets, *, batch_tile=8192, preds_transposed=False):
    """Mean over the batch of the summed per-ancestor cross-entropies.

    preds: [B, D] f32 logits (or [D, B] if preds_transposed=True — preferred, keeps the
           lane-dense layout from the producer and avoids the device transpose).
    targets: [B] int32 leaf ids.
    """
    if preds_transposed:
        xT = preds                       # [D, B] — no device transpose at all
    else:
        xT = jnp.transpose(preds)        # only the (small) logits are transposed on device
    d, B = xT.shape
    assert d == D
    tgt = jnp.reshape(targets.astype(jnp.int32), (1, B))

    bt = min(batch_tile, B)
    if bt < B:
        assert B % bt == 0 and bt % 128 == 0, \
            "pad the batch to a multiple of the (128-lane aligned) batch tile"
    elif B % 256 == 0 and (B // 2) <= batch_tile:
        bt = B // 2                      # >= 2 grid steps so both v7x TensorCores engage

    ctab = jnp.asarray(CTAB_HILO)        # tiny constant table, same block every step

    per_example = pl.pallas_call(
        _hsm_loss_kernel,
        out_shape=jax.ShapeDtypeStruct((1, B), jnp.float32),
        grid_spec=pltpu.PrefetchScalarGridSpec(
            num_scalar_prefetch=0,
            grid=(B // bt,),
            in_specs=[
                pl.BlockSpec((1, bt), lambda i: (0, i)),
                pl.BlockSpec((D, bt), lambda i: (0, i)),
                pl.BlockSpec((2 * CT_ROWS_PAD, K_PAD), lambda i: (0, 0)),
            ],
            out_specs=pl.BlockSpec((1, bt), lambda i: (0, i)),
        ),
        # independent per-block outputs -> safe to shard across TensorCores (v7x megacore);
        # 32 MiB scoped VMEM covers large lane tiles on v5e (16 MiB default) as well.
        compiler_params=pltpu.CompilerParams(
            dimension_semantics=("parallel",),
            vmem_limit_bytes=32 * 1024 * 1024,
        ),
    )(tgt, xT, ctab)

    # pairwise-accurate reduction + batch mean in the wrapper
    return jnp.sum(per_example) / B


# ------------------------------- pure reference ----------------------------------
def reference_loss(preds_np, targets_np):
    """Mirrors the PyTorch forward (single-sample F.cross_entropy per ancestor)."""
    def ce(logits, t, w, ls):
        logits = logits.astype(np.float64)
        m = np.max(logits)
        lse = m + np.log(np.sum(np.exp(logits - m)))
        lp = logits - lse
        nll = -lp[t]
        smooth = np.sum(w * (-lp)) / w[t]
        c = logits.shape[0]
        return (1.0 - ls) * nll + (ls / c) * smooth

    loss = 0.0
    for b in range(len(targets_np)):
        leaf = int(targets_np[b])
        p = leaf // N_LEAF_PER
        idx = leaf % N_LEAF_PER
        s = N_INTERNAL + p * N_LEAF_PER
        loss += ALPHA_INT[p] * ce(preds_np[b, s:s + N_LEAF_PER], idx, W_INT[p], LS_INT[p])
        loss += ALPHA_ROOT * ce(preds_np[b, 0:N_INTERNAL], p, W_ROOT, LS_ROOT)
    return loss / len(targets_np)


# ------------------------------------ main ----------------------------------------
if __name__ == "__main__":
    key = jax.random.PRNGKey(0)

    # small demo batch, plus a lane-aligned batch that exercises the 2-step (megacore) path
    for B in (16, 512):
        k_pred, k_tgt = jax.random.split(jax.random.fold_in(key, B))
        preds = jax.random.normal(k_pred, (B, D), dtype=jnp.float32)
        targets = jax.random.randint(k_tgt, (B,), 0, N_LEAVES, dtype=jnp.int32)

        loss = jax.block_until_ready(hierarchical_softmax_loss(preds, targets))
        ref = reference_loss(np.asarray(preds), np.asarray(targets))
        assert np.allclose(np.asarray(loss), ref, rtol=1e-4, atol=1e-4), (B, float(loss), float(ref))

    print("KERNEL_OK")
</pallas_src>

<mosaic_0001>
module attributes {stable_mosaic.version = 11 : i64} {
  func.func @_hsm_loss_kernel(%arg0: i32, %arg1: memref<1x16xi32, #tpu.memory_space<vmem>>, %arg2: memref<16x16xf32, #tpu.memory_space<vmem>>, %arg3: memref<48x16xf32, #tpu.memory_space<vmem>>, %arg4: memref<1x16xf32, #tpu.memory_space<vmem>>) attributes {dimension_semantics = [#tpu.dimension_semantics<parallel>], iteration_bounds = array<i64: 1>, scalar_prefetch = 0 : i64, scratch_operands = 0 : i64, tpu.core_type = #tpu.core_type<tc>, window_params = [{transform_indices = @transform_0, window_bounds = array<i64: 1, 16>}, {transform_indices = @transform_1, window_bounds = array<i64: 16, 16>}, {pipeline_mode = #tpu.pipeline_mode<synchronous>, transform_indices = @transform_2, window_bounds = array<i64: 48, 16>}, {transform_indices = @transform_3, window_bounds = array<i64: 1, 16>}]} {
    %c0 = arith.constant 0 : index
    %c0_0 = arith.constant 0 : index
    %0 = vector.load %arg2[%c0, %c0_0] : memref<16x16xf32, #tpu.memory_space<vmem>>, vector<16x16xf32>
    %c0_1 = arith.constant 0 : index
    %c0_2 = arith.constant 0 : index
    %1 = vector.load %arg1[%c0_1, %c0_2] : memref<1x16xi32, #tpu.memory_space<vmem>>, vector<1x16xi32>
    %2 = tpu.iota {dimensions = array<i32: 0>} : vector<16x16xi32>
    %3 = vector.broadcast %1 : vector<1x16xi32> to vector<16x16xi32>
    %4 = arith.cmpi eq, %2, %3 : vector<16x16xi32>
    %cst = arith.constant 1.000000e+00 : f32
    %cst_3 = arith.constant 0.000000e+00 : f32
    %5 = vector.broadcast %cst : f32 to vector<16x16xf32>
    %6 = vector.broadcast %cst_3 : f32 to vector<16x16xf32>
    %7 = arith.select %4, %5, %6 : vector<16x16xi1>, vector<16x16xf32>
    %c0_4 = arith.constant 0 : index
    %c0_5 = arith.constant 0 : index
    %8 = vector.load %arg3[%c0_4, %c0_5] : memref<48x16xf32, #tpu.memory_space<vmem>>, vector<48x16xf32>
    %cst_6 = arith.constant dense<0.000000e+00> : vector<48x16xf32>
    %9 = tpu.matmul %8, %7, %cst_6 {dimension_numbers = #tpu.dot_dimension_numbers<[1], [0], [0], [1], [0, 0, 1, 1], [], []>} : vector<48x16xf32>, vector<16x16xf32>, vector<48x16xf32> -> vector<48x16xf32>
    %10 = vector.extract_strided_slice %9 {offsets = [0, 0], sizes = [24, 16], strides = [1, 1]} : vector<48x16xf32> to vector<24x16xf32>
    %11 = vector.extract_strided_slice %9 {offsets = [24, 0], sizes = [24, 16], strides = [1, 1]} : vector<48x16xf32> to vector<24x16xf32>
    %12 = arith.addf %10, %11 : vector<24x16xf32>
    %13 = vector.extract_strided_slice %12 {offsets = [0, 0], sizes = [16, 16], strides = [1, 1]} : vector<24x16xf32> to vector<16x16xf32>
    %14 = vector.extract_strided_slice %12 {offsets = [16, 0], sizes = [1, 16], strides = [1, 1]} : vector<24x16xf32> to vector<1x16xf32>
    %15 = vector.extract_strided_slice %12 {offsets = [17, 0], sizes = [1, 16], strides = [1, 1]} : vector<24x16xf32> to vector<1x16xf32>
    %16 = vector.extract_strided_slice %12 {offsets = [18, 0], sizes = [1, 16], strides = [1, 1]} : vector<24x16xf32> to vector<1x16xf32>
    %17 = arith.fptosi %16 : vector<1x16xf32> to vector<1x16xi32>
    %18 = arith.mulf %13, %0 : vector<16x16xf32>
    %cst_7 = arith.constant dense<0.000000e+00> : vector<16xf32>
    %19 = vector.multi_reduction <add>, %18, %cst_7 [0] : vector<16x16xf32> to vector<16xf32>
    %20 = vector.shape_cast %19 : vector<16xf32> to vector<1x16xf32>
    %cst_8 = arith.constant 0.000000e+00 : f32
    %21 = vector.broadcast %cst_8 : f32 to vector<1x16xf32>
    %22 = arith.subf %21, %20 : vector<1x16xf32>
    %23 = tpu.iota {dimensions = array<i32: 0>} : vector<16x16xi32>
    %24 = vector.broadcast %17 : vector<1x16xi32> to vector<16x16xi32>
    %25 = arith.cmpi sge, %23, %24 : vector<16x16xi32>
    %c3_i32 = arith.constant 3 : i32
    %26 = vector.broadcast %c3_i32 : i32 to vector<1x16xi32>
    %27 = arith.addi %17, %26 : vector<1x16xi32>
    %28 = vector.broadcast %27 : vector<1x16xi32> to vector<16x16xi32>
    %29 = arith.cmpi slt, %23, %28 : vector<16x16xi32>
    %30 = arith.andi %25, %29 : vector<16x16xi1>
    %cst_9 = arith.constant -1.000000e+30 : f32
    %31 = vector.broadcast %cst_9 : f32 to vector<16x16xf32>
    %32 = arith.select %30, %0, %31 : vector<16x16xi1>, vector<16x16xf32>
    %cst_10 = arith.constant dense<0xFF800000> : vector<16xf32>
    %33 = vector.multi_reduction <maximumf>, %32, %cst_10 [0] : vector<16x16xf32> to vector<16xf32>
    %34 = vector.shape_cast %33 : vector<16xf32> to vector<1x16xf32>
    %35 = vector.broadcast %34 : vector<1x16xf32> to vector<16x16xf32>
    %36 = arith.subf %32, %35 : vector<16x16xf32>
    %37 = math.exp %36 : vector<16x16xf32>
    %cst_11 = arith.constant dense<0.000000e+00> : vector<16xf32>
    %38 = vector.multi_reduction <add>, %37, %cst_11 [0] : vector<16x16xf32> to vector<16xf32>
    %39 = vector.shape_cast %38 : vector<16xf32> to vector<1x16xf32>
    %40 = math.log %39 : vector<1x16xf32>
    %41 = arith.addf %34, %40 : vector<1x16xf32>
    %42 = arith.mulf %14, %41 : vector<1x16xf32>
    %43 = arith.addf %22, %42 : vector<1x16xf32>
    %c4_i32 = arith.constant 4 : i32
    %44 = vector.broadcast %c4_i32 : i32 to vector<16x16xi32>
    %45 = arith.cmpi slt, %23, %44 : vector<16x16xi32>
    %cst_12 = arith.constant -1.000000e+30 : f32
    %46 = vector.broadcast %cst_12 : f32 to vector<16x16xf32>
    %47 = arith.select %45, %0, %46 : vector<16x16xi1>, vector<16x16xf32>
    %cst_13 = arith.constant dense<0xFF800000> : vector<16xf32>
    %48 = vector.multi_reduction <maximumf>, %47, %cst_13 [0] : vector<16x16xf32> to vector<16xf32>
    %49 = vector.shape_cast %48 : vector<16xf32> to vector<1x16xf32>
    %50 = vector.broadcast %49 : vector<1x16xf32> to vector<16x16xf32>
    %51 = arith.subf %47, %50 : vector<16x16xf32>
    %52 = math.exp %51 : vector<16x16xf32>
    %cst_14 = arith.constant dense<0.000000e+00> : vector<16xf32>
    %53 = vector.multi_reduction <add>, %52, %cst_14 [0] : vector<16x16xf32> to vector<16xf32>
    %54 = vector.shape_cast %53 : vector<16xf32> to vector<1x16xf32>
    %55 = math.log %54 : vector<1x16xf32>
    %56 = arith.addf %49, %55 : vector<1x16xf32>
    %57 = arith.mulf %15, %56 : vector<1x16xf32>
    %58 = arith.addf %43, %57 : vector<1x16xf32>
    %c0_15 = arith.constant 0 : index
    %c0_16 = arith.constant 0 : index
    %59 = vector.load %arg4[%c0_15, %c0_16] : memref<1x16xf32, #tpu.memory_space<vmem>>, vector<1x16xf32>
    tpu.vector_store %arg4[%c0_15, %c0_16], %58 {strides = array<i32>} : memref<1x16xf32, #tpu.memory_space<vmem>>, vector<1x16xf32>,
    return
  }
  func.func @transform_0(%arg0: i32) -> (i32, i32) {
    %c0_i32 = arith.constant 0 : i32
    %c0_i32_0 = arith.constant 0 : i32
    return %c0_i32, %arg0 : i32, i32
  }
  func.func @transform_1(%arg0: i32) -> (i32, i32) {
    %c0_i32 = arith.constant 0 : i32
    %c0_i32_0 = arith.constant 0 : i32
    return %c0_i32, %arg0 : i32, i32
  }
  func.func @transform_2(%arg0: i32) -> (i32, i32) {
    %c0_i32 = arith.constant 0 : i32
    %c0_i32_0 = arith.constant 0 : i32
    %c0_i32_1 = arith.constant 0 : i32
    return %c0_i32, %c0_i32_0 : i32, i32
  }
  func.func @transform_3(%arg0: i32) -> (i32, i32) {
    %c0_i32 = arith.constant 0 : i32
    %c0_i32_0 = arith.constant 0 : i32
    return %c0_i32, %arg0 : i32, i32
  }
}

</mosaic_0001>

<llo_original>
// kernel: tpu_custom_call.1
$region0: #{tpu_custom_call.1}
  #allocation0 [shape = 'u32[]', space=smem, size = 0x4, offset = 0x4, fixed_abs, tag = 'smem constant byte address 0x4 - core index']
  #allocation1 [shape = 'u32[144,128]{1,0:T(1,128)}', space=vmem, size = 0x12000, scoped, tag = 'internal scratch']
  %s0 = inlined_call_operand.vmem [shape: s32[1,16], index: 0, kind: input, shape index: {}]
  %s1 = inlined_call_operand.vmem [shape: f32[16,16], index: 1, kind: input, shape index: {}]
  %s2 = inlined_call_operand.vmem [shape: f32[48,16], index: 2, kind: input, shape index: {}]
  %s3 = inlined_call_operand.hbm [shape: f32[1,16], index: 3, kind: output, shape index: {}]
  %s4 = sld [smem:[#allocation0]]
  $region22: #{tpu_custom_call.1} parent=0
    _
  %s6 = ssub.s32 1, %s4
  %s7 = scalar_select 0, %s6, %s4
  $region1: #{tpu_custom_call.1} parent=0
    #allocation2 [shape = 'u8[512]{0}', space=vmem, size = 0x400, scoped, tag = 'output window, operand 0, single buffered']
    #allocation3 [shape = 's32[1]{0}', space=sflag, size = 0x4, scoped, tag = 'scoped memory for tpu_custom_call.1']
    %8 = vsyncpa [#allocation3], 0
    // Predicated region
    $region2: #{tpu_custom_call.1} parent=1 // pred_check
      _
    $region3: #{tpu_custom_call.1} parent=1 // pred_check_branch
      %10 = sbr.rel (0) target = $region5
    $region4: #{tpu_custom_call.1} parent=1 // pred_region
      _
    $region5: #{tpu_custom_call.1} parent=1 // pred_fallthru
      _
    // Predicated region
    $region6: #{tpu_custom_call.1} parent=1 // pred_check
      _
    $region7: #{tpu_custom_call.1} parent=1 // pred_check_branch
      %12 = sbr.rel (0) target = $region9
    $region8: #{tpu_custom_call.1} parent=1 // pred_region
      _
    $region9: #{tpu_custom_call.1} parent=1 // pred_fallthru
      _
    // Predicated region
    $region10: #{tpu_custom_call.1} parent=1 // pred_check
      _
    $region11: #{tpu_custom_call.1} parent=1 // pred_check_branch
      %14 = sbr.rel (0) target = $region13
    $region12: #{tpu_custom_call.1} parent=1 // pred_region
      _
    $region13: #{tpu_custom_call.1} parent=1 // pred_fallthru
      _
    %v15 = vld [vmem:[%s1] sm:$0xff]
    %v16 = vld [vmem:[%s1 + $0x8] sm:$0xff]
    %v17 = vld [vmem:[%s0] sm:$0x1]
    %v18 = vlaneseq
    %v19 = vshrl.u32 %v18, 7
    %v20 = vadd.s32 %v19, 8
    %v21 = vlaneseq
    %v22 = vshrl.u32 %v21, 7
    %v23 = vsub.s32 0, %v22
    %v24 = vrot.slane %v17, %v23
    %vm25 = vcmp.eq.s32.totalorder %v19, %v24
    %vm26 = vcmp.eq.s32.totalorder %v20, %v24
    %v27 = vsel %vm25, 1.0, 0.0
    %v28 = vsel %vm26, 1.0, 0.0
    %v29 = vld [vmem:[%s2] sm:$0xff]
    %v30 = vld [vmem:[%s2 + $0x8] sm:$0xff]
    %v31 = vld [vmem:[%s2 + $0x10] sm:$0xff]
    %v32 = vld [vmem:[%s2 + $0x18] sm:$0xff]
    %v33 = vld [vmem:[%s2 + $0x20] sm:$0xff]
    %v34 = vld [vmem:[%s2 + $0x28] sm:$0xff]
    %vm35 = vcmask 130048
    %v37 = vsel %vm35, %v29, 0
    %v40 = vsel %vm35, %v30, 0
    %v43 = vsel %vm35, %v31, 0
    %v46 = vsel %vm35, %v32, 0
    %v49 = vsel %vm35, %v33, 0
    %v52 = vsel %vm35, %v34, 0
    %54 = vmatprep.subr.mxu0 0.0
    %55 = vmatpush1.msra.mxu0 %v27
    %56 = vmatprep.subr.mxu0 0.0
    %57 = vmatpush1.msra.mxu0 %v28
    %58 = vmatprep.subr.mxu0 0.0
    %59 = vmatpush1.msra.mxu0 0.0
    %60 = vmatprep.subr.mxu0 0.0
    %61 = vmatpush1.msra.mxu0 0.0
    %62 = vmatprep.subr.mxu0 0.0
    %63 = vmatpush1.msra.mxu0 0.0
    %64 = vmatprep.subr.mxu0 0.0
    %65 = vmatpush1.msra.mxu0 0.0
    %66 = vmatprep.subr.mxu0 0.0
    %67 = vmatpush1.msra.mxu0 0.0
    %68 = vmatprep.subr.mxu0 0.0
    %69 = vmatpush1.msra.mxu0 0.0
    %70 = vmatprep.subr.mxu0 0.0
    %71 = vmatpush1.msra.mxu0 0.0
    %72 = vmatprep.subr.mxu0 0.0
    %73 = vmatpush1.msra.mxu0 0.0
    %74 = vmatprep.subr.mxu0 0.0
    %75 = vmatpush1.msra.mxu0 0.0
    %76 = vmatprep.subr.mxu0 0.0
    %77 = vmatpush1.msra.mxu0 0.0
    %78 = vmatprep.subr.mxu0 0.0
    %79 = vmatpush1.msra.mxu0 0.0
    %80 = vmatprep.subr.mxu0 0.0
    %81 = vmatpush1.msra.mxu0 0.0
    %82 = vmatprep.subr.mxu0 0.0
    %83 = vmatpush1.msra.mxu0 0.0
    %84 = vmatprep.subr.mxu0 0.0
    %85 = vmatpush1.msra.mxu0 0.0
    %86 = vmatprep.subr.mxu0 0.0
    %87 = vmatpush1.msra.mxu0 0.0
    %88 = vmatprep.subr.mxu0 0.0
    %89 = vmatpush1.msra.mxu0 0.0
    %90 = vmatprep.subr.mxu0 0.0
    %91 = vmatpush1.msra.mxu0 0.0
    %92 = vmatprep.subr.mxu0 0.0
    %93 = vmatpush1.msra.mxu0 0.0
    %94 = vmatprep.subr.mxu0 0.0
    %95 = vmatpush1.msra.mxu0 0.0
    %96 = vmatprep.subr.mxu0 0.0
    %97 = vmatpush1.msra.mxu0 0.0
    %98 = vmatprep.subr.mxu0 0.0
    %99 = vmatpush1.msra.mxu0 0.0
    %100 = vmatprep.subr.mxu0 0.0
    %101 = vmatpush1.msra.mxu0 0.0
    %102 = vmatprep.subr.mxu0 0.0
    %103 = vmatpush1.msra.mxu0 0.0
    %104 = vmatprep.subr.mxu0 0.0
    %105 = vmatpush1.msra.mxu0 0.0
    %106 = vmatprep.subr.mxu0 0.0
    %107 = vmatpush1.msra.mxu0 0.0
    %108 = vmatprep.subr.mxu0 0.0
    %109 = vmatpush1.msra.mxu0 0.0
    %110 = vmatprep.subr.mxu0 0.0
    %111 = vmatpush1.msra.mxu0 0.0
    %112 = vmatprep.subr.mxu0 0.0
    %113 = vmatpush1.msra.mxu0 0.0
    %114 = vmatprep.subr.mxu0 0.0
    %115 = vmatpush1.msra.mxu0 0.0
    %116 = vmatprep.subr.mxu0 0.0
    %117 = vmatpush1.msra.mxu0 0.0
    %118 = vmatprep.mubr.f32.mxu0 0.0
    %119 = vmatmul.mubr.f32.gmra.mrb[0].mxu0 %v37
    %v120 = vpop.f32.mrb[0].mxu0
    %v121 = vadd.f32 0.0, %v120
    %v122 = vpop.f32.mrb[0].mxu0
    %123 = vmatprep.mubr.f32.mxu0 0.0
    %124 = vmatmul.mubr.f32.gmra.mrb[0].mxu0 %v40
    %v125 = vpop.f32.mrb[0].mxu0
    %v126 = vadd.f32 0.0, %v125
    %v127 = vpop.f32.mrb[0].mxu0
    %128 = vmatprep.mubr.f32.mxu0 0.0
    %129 = vmatmul.mubr.f32.gmra.mrb[0].mxu0 %v43
    %v130 = vpop.f32.mrb[0].mxu0
    %v131 = vadd.f32 0.0, %v130
    %v132 = vpop.f32.mrb[0].mxu0
    %133 = vmatprep.mubr.f32.mxu0 0.0
    %134 = vmatmul.mubr.f32.gmra.mrb[0].mxu0 %v46
    %v135 = vpop.f32.mrb[0].mxu0
    %v136 = vadd.f32 0.0, %v135
    %v137 = vpop.f32.mrb[0].mxu0
    %138 = vmatprep.mubr.f32.mxu0 0.0
    %139 = vmatmul.mubr.f32.gmra.mrb[0].mxu0 %v49
    %v140 = vpop.f32.mrb[0].mxu0
    %v141 = vadd.f32 0.0, %v140
    %v142 = vpop.f32.mrb[0].mxu0
    %143 = vmatprep.mubr.f32.mxu0 0.0
    %144 = vmatmul.mubr.f32.gmra.mrb[0].mxu0 %v52
    %v145 = vpop.f32.mrb[0].mxu0
    %v146 = vadd.f32 0.0, %v145
    %v147 = vpop.f32.mrb[0].mxu0
    %148 = vdwg.mxu0
    %v149 = vadd.f32 %v121, %v136
    %v150 = vadd.f32 %v126, %v141
    %v151 = vadd.f32 %v131, %v146
    %v152 = vcvt.f32.s32.to.zero.pseudo %v151
    %v153 = vmul.f32 %v149, %v15
    %v154 = vmul.f32 %v150, %v16
    %v155 = vsel %vm35, %v153, 0.0
    %v156 = vsel %vm35, %v154, 0.0
    %v157 = vadd.f32 %v155, %v156
    %v158 = vrot.slane %v157, 4
    %v159 = vadd.f32 %v157, %v158
    %v160 = vrot.slane %v159, 2
    %v161 = vadd.f32 %v159, %v160
    %v162 = vrot.slane %v161, 1
    %v163 = vadd.f32 %v161, %v162
    %v164 = vsub.f32 0.0, %v163
    %v165 = vlaneseq
    %v166 = vshrl.u32 %v165, 7
    %v167 = vsub.s32 2, %v166
    %v168 = vrot.slane %v152, %v167
    %vm169 = vcmp.ge.s32.totalorder %v19, %v168
    %vm170 = vcmp.ge.s32.totalorder %v20, %v168
    %v171 = vadd.s32 %v152, 3
    %v172 = vlaneseq
    %v173 = vshrl.u32 %v172, 7
    %v174 = vsub.s32 2, %v173
    %v175 = vrot.slane %v171, %v174
    %vm176 = vcmp.lt.s32.totalorder %v19, %v175
    %vm177 = vcmp.lt.s32.totalorder %v20, %v175
    %vm178 = vmand %vm169, %vm176
    %vm179 = vmand %vm170, %vm177
    %v180 = vsel %vm178, %v15, -1e+30
    %v181 = vsel %vm179, %v16, -1e+30
    %v182 = vsel %vm35, %v180, -inf
    %v183 = vsel %vm35, %v181, -inf
    %v184 = vmax.f32 %v182, %v183
    %v185 = vrot.slane %v184, 4
    %v186 = vmax.f32 %v184, %v185
    %v187 = vrot.slane %v186, 2
    %v188 = vmax.f32 %v186, %v187
    %v189 = vrot.slane %v188, 1
    %v190 = vmax.f32 %v188, %v189
    %v191 = vsub.f32 %v180, %v190
    %v192 = vsub.f32 %v181, %v190
    %v193 = vmul.f32 %v191, 1.442695
    %v194 = vpow.pop %v193
    %v195 = vmul.f32 %v192, 1.442695
    %v196 = vpow.pop %v195
    %v197 = vsel %vm35, %v194, 0.0
    %v198 = vsel %vm35, %v196, 0.0
    %v199 = vadd.f32 %v197, %v198
    %v200 = vrot.slane %v199, 4
    %v201 = vadd.f32 %v199, %v200
    %v202 = vrot.slane %v201, 2
    %v203 = vadd.f32 %v201, %v202
    %v204 = vrot.slane %v203, 1
    %v205 = vadd.f32 %v203, %v204
    %v206 = vlog2.pop %v205
    %v207 = vmul.f32 %v206, 0.6931472
    %v208 = vadd.f32 %v190, %v207
    %v209 = vmul.f32 %v151, %v208
    %v210 = vadd.f32 %v164, %v209
    %vm211 = vcmp.lt.s32.totalorder %v19, 4
    %vm212 = vcmp.lt.s32.totalorder %v20, 4
    %v213 = vsel %vm211, %v15, -1e+30
    %v214 = vsel %vm212, %v16, -1e+30
    %v215 = vsel %vm35, %v213, -inf
    %v216 = vsel %vm35, %v214, -inf
    %v217 = vmax.f32 %v215, %v216
    %v218 = vrot.slane %v217, 4
    %v219 = vmax.f32 %v217, %v218
    %v220 = vrot.slane %v219, 2
    %v221 = vmax.f32 %v219, %v220
    %v222 = vrot.slane %v221, 1
    %v223 = vmax.f32 %v221, %v222
    %v224 = vsub.f32 %v213, %v223
    %v225 = vsub.f32 %v214, %v223
    %v226 = vmul.f32 %v224, 1.442695
    %v227 = vpow.pop %v226
    %v228 = vmul.f32 %v225, 1.442695
    %v229 = vpow.pop %v228
    %v230 = vsel %vm35, %v227, 0.0
    %v231 = vsel %vm35, %v229, 0.0
    %v232 = vadd.f32 %v230, %v231
    %v233 = vrot.slane %v232, 4
    %v234 = vadd.f32 %v232, %v233
    %v235 = vrot.slane %v234, 2
    %v236 = vadd.f32 %v234, %v235
    %v237 = vrot.slane %v236, 1
    %v238 = vadd.f32 %v236, %v237
    %v239 = vlog2.pop %v238
    %v240 = vmul.f32 %v239, 0.6931472
    %v241 = vadd.f32 %v223, %v240
    %v242 = vmul.f32 %v151, %v241
    %v244 = vrot.slane %v242, 1
    %v246 = vadd.f32 %v210, %v244
    %vm247 = vcmask 122880
    %248 = vst.msk [vmem:[#allocation2] sm:$0x1] %vm247, %v246
    // Predicated region
    $region14: #{tpu_custom_call.1} parent=1 // pred_check
      _
    $region15: #{tpu_custom_call.1} parent=1 // pred_check_branch
      %250 = sbr.rel (0) target = $region17
    $region16: #{tpu_custom_call.1} parent=1 // pred_region
      %s252 = ssub.s32 16, 16
      %253 = vsyncadd [#allocation3], %s252
      %s255 = sshll.u32 [#allocation2], 4
      %s256 = int_to_ptr.vmem [resolvable:$true] %s255
      %258 = dma.vmem_to_hbm [thread:$0]  %s256, 16, %s3, [#allocation3]
    $region17: #{tpu_custom_call.1} parent=1 // pred_fallthru
      _
    // Predicated region
    $region18: #{tpu_custom_call.1} parent=1 // pred_check
      _
    $region19: #{tpu_custom_call.1} parent=1 // pred_check_branch
      %260 = sbr.rel (0) target = $region21
    $region20: #{tpu_custom_call.1} parent=1 // pred_region
      %261 = dma.done [#allocation3], 16
    $region21: #{tpu_custom_call.1} parent=1 // pred_fallthru
      _
    %262 = vsyncpa [#allocation3], 1

</llo_original>
